<compile_context>
chip_gen: v7x
topology: tpu7x:2x2x1
jax: 0.10.0
libtpu: 0.0.40
codegen_flags: <defaults>
</compile_context>

<pallas_src>
import functools

import jax
import jax.numpy as jnp
from jax.experimental import pallas as pl
from jax.experimental.pallas import tpu as pltpu

SELU_ALPHA = 1.6732632423543772
SELU_SCALE = 1.0507009873554805


def _silu(x):
    return x * jax.nn.sigmoid(x)


def _selu(x):
    # exp only on the non-positive branch (avoids inf in the discarded branch).
    return SELU_SCALE * jnp.where(
        x > 0, x, SELU_ALPHA * (jnp.exp(jnp.minimum(x, 0.0)) - 1.0))


def _round_up(n, m):
    return (n + m - 1) // m * m


def _pad2(a, rows, cols):
    r = rows - a.shape[0]
    c = cols - a.shape[1]
    if r == 0 and c == 0:
        return a
    return jnp.pad(a, ((0, r), (0, c)))


def cdae_kernel(x_ref, u_ref,
                wq0_ref, bq0_ref, wq1_ref, bq1_ref,
                wp0_ref, bp0_ref, wp1_ref, bp1_ref,
                out_ref, h_scr):
    j = pl.program_id(1)

    # Encoder + decoder hidden layer: once per batch tile (j == 0), result
    # kept in VMEM scratch for the remaining output tiles of this batch tile.
    @pl.when(j == 0)
    def _():
        # ---- encoder (dropout == identity at inference) ----
        h = jnp.dot(x_ref[...], wq0_ref[...],
                    preferred_element_type=jnp.float32) + bq0_ref[...]
        h = _silu(h)
        h = jnp.dot(h.astype(jnp.bfloat16), wq1_ref[...],
                    preferred_element_type=jnp.float32) + bq1_ref[...]
        h = _silu(h)
        # ---- add per-user latent node ----
        z = h + u_ref[...]
        # ---- decoder hidden layer (SELU) ----
        h = jnp.dot(z.astype(jnp.bfloat16), wp0_ref[...],
                    preferred_element_type=jnp.float32) + bp0_ref[...]
        h_scr[...] = _selu(h).astype(h_scr.dtype)

    # ---- decoder output layer: one lane-dense N tile per grid step ----
    out_ref[...] = (jnp.dot(h_scr[...], wp1_ref[...],
                            preferred_element_type=jnp.float32)
                    + bp1_ref[...]).astype(out_ref.dtype)


def cdae_forward(x, batch_user, params, *, tile_b=256, tile_n=512):
    """x: [B, input_dim] float32, batch_user: [B] int32."""
    (wq0, bq0), (wq1, bq1), (wp0, bp0), (wp1, bp1), user_node = params
    B, D_in = x.shape
    H1 = wq0.shape[1]
    H2 = wq1.shape[1]
    assert wp1.shape[1] == D_in

    f32, bf16 = jnp.float32, jnp.bfloat16

    # ---- tile sizing --------------------------------------------------------
    tile_b = max(16, min(tile_b, _round_up(B, 16)))       # bf16 sublane packing
    tile_n = max(128, min(tile_n, _round_up(D_in, 128)))  # lane-dense stores
    Bp = _round_up(B, tile_b)
    Np = _round_up(D_in, tile_n)
    H2p = _round_up(H2, 128)                               # pad latent dim

    # ---- parameter prep (cheap JAX glue, scheduled around the kernel) -------
    # Weights -> bf16; biases stay f32.  Zero padding is exact (SiLU(0) = 0,
    # padded wp0 rows see z == 0, padded wp1/bp1 columns are sliced off).
    wq0b = wq0.astype(bf16)
    bq0f = bq0.astype(f32)
    wq1b = _pad2(wq1, H1, H2p).astype(bf16)
    bq1f = _pad2(bq1, 1, H2p).astype(f32)
    wp0b = _pad2(wp0, H2p, H1).astype(bf16)
    bp0f = bp0.astype(f32)
    wp1b = _pad2(wp1, H1, Np).astype(bf16)
    bp1f = _pad2(bp1, 1, Np).astype(f32)

    # Inputs: x is 0/1 implicit feedback so the bf16 cast is exact; gather user
    # rows outside the kernel (matmuls are the hot path), pad batch + latent.
    xb = _pad2(x, Bp, D_in).astype(bf16)
    u = jnp.take(user_node, batch_user, axis=0).astype(f32)        # [B, H2]
    u = _pad2(u, Bp, H2p)                                          # [Bp, H2p]

    nb, nn = Bp // tile_b, Np // tile_n

    ins = (xb, u, wq0b, bq0f, wq1b, bq1f, wp0b, bp0f, wp1b, bp1f)
    flops = 2 * Bp * (D_in * H1 + H1 * H2p + H2p * H1 + H1 * Np)
    transcendentals = Bp * (H1 + H2p + H1)                # sigmoid x2, selu exp
    bytes_accessed = sum(int(a.size) * a.dtype.itemsize for a in ins) \
        + Bp * Np * 4

    const = lambda shape: pl.BlockSpec(shape, lambda i, j: (0, 0))

    out = pl.pallas_call(
        cdae_kernel,
        out_shape=jax.ShapeDtypeStruct((Bp, Np), jnp.float32),
        grid_spec=pltpu.PrefetchScalarGridSpec(
            num_scalar_prefetch=0,
            grid=(nb, nn),
            in_specs=[
                pl.BlockSpec((tile_b, D_in), lambda i, j: (i, 0)),   # x (bf16)
                pl.BlockSpec((tile_b, H2p), lambda i, j: (i, 0)),    # user rows
                const((D_in, H1)), const((1, H1)),                   # q-layer 0
                const((H1, H2p)), const((1, H2p)),                   # q-layer 1
                const((H2p, H1)), const((1, H1)),                    # p-layer 0
                pl.BlockSpec((H1, tile_n), lambda i, j: (0, j)),     # p-layer 1 W
                pl.BlockSpec((1, tile_n), lambda i, j: (0, j)),      # p-layer 1 b
            ],
            out_specs=pl.BlockSpec((tile_b, tile_n), lambda i, j: (i, j)),
            scratch_shapes=[pltpu.VMEM((tile_b, H1), jnp.bfloat16)],
        ),
        compiler_params=pltpu.CompilerParams(
            dimension_semantics=("parallel", "arbitrary"),
            vmem_limit_bytes=32 * 1024 * 1024,
        ),
        cost_estimate=pl.CostEstimate(
            flops=flops,
            transcendentals=transcendentals,
            bytes_accessed=bytes_accessed,
        ),
    )(*ins)

    return out[:B, :D_in]


def init_params(key, input_dim, hidden_dims, n_users):
    """Deterministic synthetic init matching the module's parameter shapes."""
    q_dims = [input_dim] + hidden_dims
    p_dims = q_dims[::-1]

    def linear(key, d_in, d_out):
        kw, kb = jax.random.split(key)
        bound = 1.0 / jnp.sqrt(d_in)
        w = jax.random.uniform(kw, (d_in, d_out), jnp.float32, -bound, bound)
        b = jax.random.uniform(kb, (1, d_out), jnp.float32, -bound, bound)
        return w, b

    keys = jax.random.split(key, 5)
    q0 = linear(keys[0], q_dims[0], q_dims[1])
    q1 = linear(keys[1], q_dims[1], q_dims[2])
    p0 = linear(keys[2], p_dims[0], p_dims[1])
    p1 = linear(keys[3], p_dims[1], p_dims[2])
    user_node = jax.random.normal(keys[4], (n_users, q_dims[-1]), jnp.float32)
    return (q0, q1, p0, p1, user_node)


def reference_forward(x, batch_user, params):
    """Pure-JAX reference on the same bf16-weight / f32-accumulate recipe."""
    (wq0, bq0), (wq1, bq1), (wp0, bp0), (wp1, bp1), user_node = params
    bf16, f32 = jnp.bfloat16, jnp.float32
    dot = lambda a, w: jnp.dot(a.astype(bf16), w.astype(bf16),
                               preferred_element_type=f32)
    h = _silu(dot(x, wq0) + bq0)
    h = _silu(dot(h, wq1) + bq1)
    z = h + user_node[batch_user]
    h = _selu(dot(z, wp0) + bp0)
    return dot(h, wp1) + bp1


if __name__ == "__main__":
    B = 24
    INPUT_DIM = 256          # number of items
    HIDDEN_DIMS = [128, 64]  # model_args.hidden_dims
    N_USERS = 16

    key = jax.random.PRNGKey(0)
    kx, ku, kp = jax.random.split(key, 3)

    # implicit-feedback (0/1) interaction matrix
    x = (jax.random.uniform(kx, (B, INPUT_DIM)) < 0.1).astype(jnp.float32)
    batch_user = jax.random.randint(ku, (B,), 0, N_USERS, dtype=jnp.int32)
    params = init_params(kp, INPUT_DIM, HIDDEN_DIMS, N_USERS)

    # Small tiles here so the demo exercises a real multi-tile grid
    # (2 batch tiles x 2 output tiles); production defaults are 256 / 512.
    fwd = jax.jit(functools.partial(cdae_forward, tile_b=16, tile_n=128))
    out = jax.block_until_ready(fwd(x, batch_user, params))

    ref = reference_forward(x, batch_user, params)
    assert out.shape == (B, INPUT_DIM)
    assert jnp.allclose(out, ref, atol=1e-3, rtol=1e-3), \
        float(jnp.max(jnp.abs(out - ref)))

    print("KERNEL_OK")
</pallas_src>

<mosaic_0001>
module attributes {stable_mosaic.version = 11 : i64} {
  func.func @cdae_kernel(%arg0: i32, %arg1: i32, %arg2: memref<16x256xbf16, #tpu.memory_space<vmem>>, %arg3: memref<16x128xf32, #tpu.memory_space<vmem>>, %arg4: memref<256x128xbf16, #tpu.memory_space<vmem>>, %arg5: memref<1x128xf32, #tpu.memory_space<vmem>>, %arg6: memref<128x128xbf16, #tpu.memory_space<vmem>>, %arg7: memref<1x128xf32, #tpu.memory_space<vmem>>, %arg8: memref<128x128xbf16, #tpu.memory_space<vmem>>, %arg9: memref<1x128xf32, #tpu.memory_space<vmem>>, %arg10: memref<128x128xbf16, #tpu.memory_space<vmem>>, %arg11: memref<1x128xf32, #tpu.memory_space<vmem>>, %arg12: memref<16x128xf32, #tpu.memory_space<vmem>>, %arg13: memref<16x128xbf16, #tpu.memory_space<vmem>>) attributes {dimension_semantics = [#tpu.dimension_semantics<parallel>, #tpu.dimension_semantics<arbitrary>], iteration_bounds = array<i64: 2, 2>, scalar_prefetch = 0 : i64, scratch_operands = 1 : i64, tpu.core_type = #tpu.core_type<tc>, window_params = [{transform_indices = @transform_0, window_bounds = array<i64: 16, 256>}, {transform_indices = @transform_1, window_bounds = array<i64: 16, 128>}, {pipeline_mode = #tpu.pipeline_mode<synchronous>, transform_indices = @transform_2, window_bounds = array<i64: 256, 128>}, {pipeline_mode = #tpu.pipeline_mode<synchronous>, transform_indices = @transform_3, window_bounds = array<i64: 1, 128>}, {pipeline_mode = #tpu.pipeline_mode<synchronous>, transform_indices = @transform_4, window_bounds = array<i64: 128, 128>}, {pipeline_mode = #tpu.pipeline_mode<synchronous>, transform_indices = @transform_5, window_bounds = array<i64: 1, 128>}, {pipeline_mode = #tpu.pipeline_mode<synchronous>, transform_indices = @transform_6, window_bounds = array<i64: 128, 128>}, {pipeline_mode = #tpu.pipeline_mode<synchronous>, transform_indices = @transform_7, window_bounds = array<i64: 1, 128>}, {transform_indices = @transform_8, window_bounds = array<i64: 128, 128>}, {transform_indices = @transform_9, window_bounds = array<i64: 1, 128>}, {transform_indices = @transform_10, window_bounds = array<i64: 16, 128>}]} {
    %c0_i32 = arith.constant 0 : i32
    %0 = arith.cmpi eq, %arg1, %c0_i32 : i32
    %1 = arith.extui %0 : i1 to i32
    %c0_i32_0 = arith.constant 0 : i32
    %2 = arith.cmpi ne, %1, %c0_i32_0 : i32
    scf.if %2 {
      %c0_8 = arith.constant 0 : index
      %c0_9 = arith.constant 0 : index
      %10 = vector.load %arg2[%c0_8, %c0_9] : memref<16x256xbf16, #tpu.memory_space<vmem>>, vector<16x256xbf16>
      %c0_10 = arith.constant 0 : index
      %c0_11 = arith.constant 0 : index
      %11 = vector.load %arg4[%c0_10, %c0_11] : memref<256x128xbf16, #tpu.memory_space<vmem>>, vector<256x128xbf16>
      %cst_12 = arith.constant dense<0.000000e+00> : vector<16x128xf32>
      %12 = tpu.matmul %10, %11, %cst_12 {dimension_numbers = #tpu.dot_dimension_numbers<[1], [0], [0], [1], [0, 0, 1, 1], [], []>} : vector<16x256xbf16>, vector<256x128xbf16>, vector<16x128xf32> -> vector<16x128xf32>
      %c0_13 = arith.constant 0 : index
      %c0_14 = arith.constant 0 : index
      %13 = vector.load %arg5[%c0_13, %c0_14] : memref<1x128xf32, #tpu.memory_space<vmem>>, vector<1x128xf32>
      %14 = vector.broadcast %13 : vector<1x128xf32> to vector<16x128xf32>
      %15 = arith.addf %12, %14 : vector<16x128xf32>
      %16 = arith.negf %15 : vector<16x128xf32>
      %17 = math.exp %16 : vector<16x128xf32>
      %cst_15 = arith.constant 1.000000e+00 : f32
      %18 = vector.broadcast %cst_15 : f32 to vector<16x128xf32>
      %19 = arith.addf %18, %17 : vector<16x128xf32>
      %20 = arith.divf %18, %19 : vector<16x128xf32>
      %21 = arith.mulf %15, %20 : vector<16x128xf32>
      %22 = arith.truncf %21 : vector<16x128xf32> to vector<16x128xbf16>
      %c0_16 = arith.constant 0 : index
      %c0_17 = arith.constant 0 : index
      %23 = vector.load %arg6[%c0_16, %c0_17] : memref<128x128xbf16, #tpu.memory_space<vmem>>, vector<128x128xbf16>
      %cst_18 = arith.constant dense<0.000000e+00> : vector<16x128xf32>
      %24 = tpu.matmul %22, %23, %cst_18 {dimension_numbers = #tpu.dot_dimension_numbers<[1], [0], [0], [1], [0, 0, 1, 1], [], []>} : vector<16x128xbf16>, vector<128x128xbf16>, vector<16x128xf32> -> vector<16x128xf32>
      %c0_19 = arith.constant 0 : index
      %c0_20 = arith.constant 0 : index
      %25 = vector.load %arg7[%c0_19, %c0_20] : memref<1x128xf32, #tpu.memory_space<vmem>>, vector<1x128xf32>
      %26 = vector.broadcast %25 : vector<1x128xf32> to vector<16x128xf32>
      %27 = arith.addf %24, %26 : vector<16x128xf32>
      %28 = arith.negf %27 : vector<16x128xf32>
      %29 = math.exp %28 : vector<16x128xf32>
      %cst_21 = arith.constant 1.000000e+00 : f32
      %30 = vector.broadcast %cst_21 : f32 to vector<16x128xf32>
      %31 = arith.addf %30, %29 : vector<16x128xf32>
      %32 = arith.divf %30, %31 : vector<16x128xf32>
      %33 = arith.mulf %27, %32 : vector<16x128xf32>
      %c0_22 = arith.constant 0 : index
      %c0_23 = arith.constant 0 : index
      %34 = vector.load %arg3[%c0_22, %c0_23] : memref<16x128xf32, #tpu.memory_space<vmem>>, vector<16x128xf32>
      %35 = arith.addf %33, %34 : vector<16x128xf32>
      %36 = arith.truncf %35 : vector<16x128xf32> to vector<16x128xbf16>
      %c0_24 = arith.constant 0 : index
      %c0_25 = arith.constant 0 : index
      %37 = vector.load %arg8[%c0_24, %c0_25] : memref<128x128xbf16, #tpu.memory_space<vmem>>, vector<128x128xbf16>
      %cst_26 = arith.constant dense<0.000000e+00> : vector<16x128xf32>
      %38 = tpu.matmul %36, %37, %cst_26 {dimension_numbers = #tpu.dot_dimension_numbers<[1], [0], [0], [1], [0, 0, 1, 1], [], []>} : vector<16x128xbf16>, vector<128x128xbf16>, vector<16x128xf32> -> vector<16x128xf32>
      %c0_27 = arith.constant 0 : index
      %c0_28 = arith.constant 0 : index
      %39 = vector.load %arg9[%c0_27, %c0_28] : memref<1x128xf32, #tpu.memory_space<vmem>>, vector<1x128xf32>
      %40 = vector.broadcast %39 : vector<1x128xf32> to vector<16x128xf32>
      %41 = arith.addf %38, %40 : vector<16x128xf32>
      %cst_29 = arith.constant 0.000000e+00 : f32
      %42 = vector.broadcast %cst_29 : f32 to vector<16x128xf32>
      %43 = arith.cmpf ogt, %41, %42 : vector<16x128xf32>
      %cst_30 = arith.constant 0.000000e+00 : f32
      %44 = vector.broadcast %cst_30 : f32 to vector<16x128xf32>
      %45 = arith.minimumf %41, %44 : vector<16x128xf32>
      %46 = math.exp %45 : vector<16x128xf32>
      %cst_31 = arith.constant 1.000000e+00 : f32
      %47 = vector.broadcast %cst_31 : f32 to vector<16x128xf32>
      %48 = arith.subf %46, %47 : vector<16x128xf32>
      %cst_32 = arith.constant 1.67326319 : f32
      %49 = vector.broadcast %cst_32 : f32 to vector<16x128xf32>
      %50 = arith.mulf %49, %48 : vector<16x128xf32>
      %51 = arith.select %43, %41, %50 : vector<16x128xi1>, vector<16x128xf32>
      %cst_33 = arith.constant 1.05070102 : f32
      %52 = vector.broadcast %cst_33 : f32 to vector<16x128xf32>
      %53 = arith.mulf %52, %51 : vector<16x128xf32>
      %54 = arith.truncf %53 : vector<16x128xf32> to vector<16x128xbf16>
      %c0_34 = arith.constant 0 : index
      %c0_35 = arith.constant 0 : index
      %55 = vector.load %arg13[%c0_34, %c0_35] : memref<16x128xbf16, #tpu.memory_space<vmem>>, vector<16x128xbf16>
      tpu.vector_store %arg13[%c0_34, %c0_35], %54 {strides = array<i32>} : memref<16x128xbf16, #tpu.memory_space<vmem>>, vector<16x128xbf16>,
    } else {
    }
    %c0 = arith.constant 0 : index
    %c0_1 = arith.constant 0 : index
    %3 = vector.load %arg13[%c0, %c0_1] : memref<16x128xbf16, #tpu.memory_space<vmem>>, vector<16x128xbf16>
    %c0_2 = arith.constant 0 : index
    %c0_3 = arith.constant 0 : index
    %4 = vector.load %arg10[%c0_2, %c0_3] : memref<128x128xbf16, #tpu.memory_space<vmem>>, vector<128x128xbf16>
    %cst = arith.constant dense<0.000000e+00> : vector<16x128xf32>
    %5 = tpu.matmul %3, %4, %cst {dimension_numbers = #tpu.dot_dimension_numbers<[1], [0], [0], [1], [0, 0, 1, 1], [], []>} : vector<16x128xbf16>, vector<128x128xbf16>, vector<16x128xf32> -> vector<16x128xf32>
    %c0_4 = arith.constant 0 : index
    %c0_5 = arith.constant 0 : index
    %6 = vector.load %arg11[%c0_4, %c0_5] : memref<1x128xf32, #tpu.memory_space<vmem>>, vector<1x128xf32>
    %7 = vector.broadcast %6 : vector<1x128xf32> to vector<16x128xf32>
    %8 = arith.addf %5, %7 : vector<16x128xf32>
    %c0_6 = arith.constant 0 : index
    %c0_7 = arith.constant 0 : index
    %9 = vector.load %arg12[%c0_6, %c0_7] : memref<16x128xf32, #tpu.memory_space<vmem>>, vector<16x128xf32>
    tpu.vector_store %arg12[%c0_6, %c0_7], %8 {strides = array<i32>} : memref<16x128xf32, #tpu.memory_space<vmem>>, vector<16x128xf32>,
    return
  }
  func.func @transform_0(%arg0: i32, %arg1: i32) -> (i32, i32) {
    %c0_i32 = arith.constant 0 : i32
    %c0_i32_0 = arith.constant 0 : i32
    return %arg0, %c0_i32 : i32, i32
  }
  func.func @transform_1(%arg0: i32, %arg1: i32) -> (i32, i32) {
    %c0_i32 = arith.constant 0 : i32
    %c0_i32_0 = arith.constant 0 : i32
    return %arg0, %c0_i32 : i32, i32
  }
  func.func @transform_2(%arg0: i32, %arg1: i32) -> (i32, i32) {
    %c0_i32 = arith.constant 0 : i32
    %c0_i32_0 = arith.constant 0 : i32
    %c0_i32_1 = arith.constant 0 : i32
    return %c0_i32, %c0_i32_0 : i32, i32
  }
  func.func @transform_3(%arg0: i32, %arg1: i32) -> (i32, i32) {
    %c0_i32 = arith.constant 0 : i32
    %c0_i32_0 = arith.constant 0 : i32
    %c0_i32_1 = arith.constant 0 : i32
    return %c0_i32, %c0_i32_0 : i32, i32
  }
  func.func @transform_4(%arg0: i32, %arg1: i32) -> (i32, i32) {
    %c0_i32 = arith.constant 0 : i32
    %c0_i32_0 = arith.constant 0 : i32
    %c0_i32_1 = arith.constant 0 : i32
    return %c0_i32, %c0_i32_0 : i32, i32
  }
  func.func @transform_5(%arg0: i32, %arg1: i32) -> (i32, i32) {
    %c0_i32 = arith.constant 0 : i32
    %c0_i32_0 = arith.constant 0 : i32
    %c0_i32_1 = arith.constant 0 : i32
    return %c0_i32, %c0_i32_0 : i32, i32
  }
  func.func @transform_6(%arg0: i32, %arg1: i32) -> (i32, i32) {
    %c0_i32 = arith.constant 0 : i32
    %c0_i32_0 = arith.constant 0 : i32
    %c0_i32_1 = arith.constant 0 : i32
    return %c0_i32, %c0_i32_0 : i32, i32
  }
  func.func @transform_7(%arg0: i32, %arg1: i32) -> (i32, i32) {
    %c0_i32 = arith.constant 0 : i32
    %c0_i32_0 = arith.constant 0 : i32
    %c0_i32_1 = arith.constant 0 : i32
    return %c0_i32, %c0_i32_0 : i32, i32
  }
  func.func @transform_8(%arg0: i32, %arg1: i32) -> (i32, i32) {
    %c0_i32 = arith.constant 0 : i32
    %c0_i32_0 = arith.constant 0 : i32
    return %c0_i32, %arg1 : i32, i32
  }
  func.func @transform_9(%arg0: i32, %arg1: i32) -> (i32, i32) {
    %c0_i32 = arith.constant 0 : i32
    %c0_i32_0 = arith.constant 0 : i32
    return %c0_i32, %arg1 : i32, i32
  }
  func.func @transform_10(%arg0: i32, %arg1: i32) -> (i32, i32) {
    %c0_i32 = arith.constant 0 : i32
    return %arg0, %arg1 : i32, i32
  }
}

</mosaic_0001>

<llo_original>
// kernel: cdae_forward.1
$region0: #{cdae_forward.1}
  #allocation0 [shape = 'u32[]', space=smem, size = 0x4, offset = 0x4, fixed_abs, tag = 'smem constant byte address 0x4 - core index']
  #allocation1 [shape = 'u32[144,128]{1,0:T(1,128)}', space=vmem, size = 0x12000, scoped, tag = 'internal scratch']
  #allocation2 [shape = 'bf16[16,128]{1,0:T(16,128)(2,1)}', space=vmem, size = 0x1000, scoped, tag = 'scratch operand']
  %s0 = inlined_call_operand.vmem [shape: bf16[32,256], index: 0, kind: input, shape index: {}]
  %s1 = inlined_call_operand.vmem [shape: f32[32,128], index: 1, kind: input, shape index: {}]
  %s2 = inlined_call_operand.vmem [shape: bf16[256,128], index: 2, kind: input, shape index: {}]
  %s3 = inlined_call_operand.vmem [shape: f32[1,128], index: 3, kind: input, shape index: {}]
  %s4 = inlined_call_operand.vmem [shape: bf16[128,128], index: 4, kind: input, shape index: {}]
  %s5 = inlined_call_operand.vmem [shape: f32[1,128], index: 5, kind: input, shape index: {}]
  %s6 = inlined_call_operand.vmem [shape: bf16[128,128], index: 6, kind: input, shape index: {}]
  %s7 = inlined_call_operand.vmem [shape: f32[1,128], index: 7, kind: input, shape index: {}]
  %s8 = inlined_call_operand.vmem [shape: bf16[128,256], index: 8, kind: input, shape index: {}]
  %s9 = inlined_call_operand.vmem [shape: f32[1,256], index: 9, kind: input, shape index: {}]
  %s10 = inlined_call_operand.vmem [shape: f32[32,256], index: 10, kind: output, shape index: {}]
  %s11 = sld [smem:[#allocation0]]
  $region152: #{cdae_forward.1} parent=0
    _
  %s13 = ssub.s32 1, %s11
  %s14 = scalar_select 0, %s13, %s11
  $region1: #{cdae_forward.1} parent=0
    #allocation3 [shape = 'u8[65536]{0}', space=vmem, size = 0x10000, scoped, tag = 'input window, operand 8']
    #allocation4 [shape = 'u8[16384]{0}', space=vmem, size = 0x4000, scoped, tag = 'output window, operand 0']
    loop: start=0, step=1, limit=6
    $region2: #{cdae_forward.1} parent=1 // loop_pre_header
      _
    $region3: #{cdae_forward.1} parent=1 // loop_header
      %s16 = sphi 0, %s20
      %p17 = scmp.ge.s32.totalorder %s16, 6
      %s23 = sphi 0, %s35
      %s24 = sphi 0, %s31
      %s25 = sphi 0, %s23
      %s26 = sphi 0, %s24
      %s27 = sphi 0, %s25
      %s28 = sphi 0, %s26
      %s38 = sphi 0, %s40
      %s41 = sphi 0, %s38
      %s42 = sphi 0, %s41
      %s58 = sphi 0, %s42
      %s64 = sphi 0, %s66
      %s67 = sphi 0, %s64
      %s68 = sphi 0, %s67
      %s84 = sphi 0, %s68
      %s88 = sphi 0, %s88
      %s90 = sphi 0, %s88
      %s91 = sphi 0, %s90
      %s105 = sphi 0, %s91
      %s109 = sphi 0, %s109
      %s111 = sphi 0, %s109
      %s112 = sphi 0, %s111
      %s126 = sphi 0, %s112
      %s130 = sphi 0, %s130
      %s132 = sphi 0, %s130
      %s133 = sphi 0, %s132
      %s147 = sphi 0, %s133
      %s151 = sphi 0, %s151
      %s153 = sphi 0, %s151
      %s154 = sphi 0, %s153
      %s168 = sphi 0, %s154
      %s172 = sphi 0, %s172
      %s174 = sphi 0, %s172
      %s175 = sphi 0, %s174
      %s189 = sphi 0, %s175
      %s193 = sphi 0, %s193
      %s195 = sphi 0, %s193
      %s196 = sphi 0, %s195
      %s210 = sphi 0, %s196
      %s216 = sphi 0, %s218
      %s219 = sphi 0, %s216
      %s220 = sphi 0, %s219
      %s236 = sphi 0, %s220
      %s242 = sphi 0, %s244
      %s245 = sphi 0, %s242
      %s246 = sphi 0, %s245
      %s262 = sphi 0, %s246
      %s270 = sphi 0, %s272
      %s273 = sphi 0, %s270
      %s274 = sphi 0, %s273
      %s290 = sphi 0, %s274
    $region4: #{cdae_forward.1} parent=1 // loop_header_branch
      %19 = sbr.rel (%p17) target = $region8
    $region5: #{cdae_forward.1} parent=1 // loop_body
      %s21 = ssub.s32 %s16, 1
      %s22 = ssub.s32 %s16, 2
      %s29 = sadd.s32 1, %s24
      %p30 = scmp.ge.s32.totalorder %s29, 2
      %s31 = scalar_select %p30, 0, %s29
      %s32 = sadd.s32 1, %s23
      %s33 = scalar_select %p30, %s32, %s23
      %p34 = scmp.ge.s32.totalorder %s33, 2
      %s35 = scalar_select %p34, 0, %s33
      %s36 = ssub.s32 %s23, %s35
      %p37 = scmp.eq.s32.totalorder %s36, 0
      %s39 = sadd.s32 %s38, 1
      %s40 = scalar_select %p37, %s38, %s39
      %p43 = pneg %p37
      %p44 = scmp.eq.s32.totalorder %s16, 3
      %p45 = por %p43, %p44
      %p46 = scmp.ne.s32.totalorder %s38, %s41
      %p47 = scmp.eq.s32.totalorder %s16, 0
      %p48 = por %p46, %p47
      %p49 = scmp.ne.s32.totalorder %s38, %s41
      %p50 = scmp.eq.s32.totalorder %s21, 3
      %p51 = por %p49, %p50
      %p52 = scmp.ne.s32.totalorder %s41, %s42
      %p53 = scmp.eq.s32.totalorder %s21, 0
      %p54 = por %p52, %p53
      %p55 = scmp.ne.s32.totalorder %s41, %s42
      %p56 = scmp.eq.s32.totalorder %s22, 3
      %p57 = por %p55, %p56
      %p59 = scmp.ne.s32.totalorder %s42, %s58
      %p60 = scmp.eq.s32.totalorder %s22, 0
      %p61 = por %p59, %p60
      %s62 = ssub.s32 %s23, %s35
      %p63 = scmp.eq.s32.totalorder %s62, 0
      %s65 = sadd.s32 %s64, 1
      %s66 = scalar_select %p63, %s64, %s65
      %p69 = pneg %p63
      %p70 = scmp.eq.s32.totalorder %s16, 3
      %p71 = por %p69, %p70
      %p72 = scmp.ne.s32.totalorder %s64, %s67
      %p73 = scmp.eq.s32.totalorder %s16, 0
      %p74 = por %p72, %p73
      %p75 = scmp.ne.s32.totalorder %s64, %s67
      %p76 = scmp.eq.s32.totalorder %s21, 3
      %p77 = por %p75, %p76
      %p78 = scmp.ne.s32.totalorder %s67, %s68
      %p79 = scmp.eq.s32.totalorder %s21, 0
      %p80 = por %p78, %p79
      %p81 = scmp.ne.s32.totalorder %s67, %s68
      %p82 = scmp.eq.s32.totalorder %s22, 3
      %p83 = por %p81, %p82
      %p85 = scmp.ne.s32.totalorder %s68, %s84
      %p86 = scmp.eq.s32.totalorder %s22, 0
      %p87 = por %p85, %p86
      %s89 = sadd.s32 %s88, 1
      %p92 = scmp.eq.s32.totalorder %s16, 3
      %p93 = scmp.ne.s32.totalorder %s88, %s90
      %p94 = scmp.eq.s32.totalorder %s16, 0
      %p95 = por %p93, %p94
      %p96 = scmp.ne.s32.totalorder %s88, %s90
      %p97 = scmp.eq.s32.totalorder %s21, 3
      %p98 = por %p96, %p97
      %p99 = scmp.ne.s32.totalorder %s90, %s91
      %p100 = scmp.eq.s32.totalorder %s21, 0
      %p101 = por %p99, %p100
      %p102 = scmp.ne.s32.totalorder %s90, %s91
      %p103 = scmp.eq.s32.totalorder %s22, 3
      %p104 = por %p102, %p103
      %p106 = scmp.ne.s32.totalorder %s91, %s105
      %p107 = scmp.eq.s32.totalorder %s22, 0
      %p108 = por %p106, %p107
      %s110 = sadd.s32 %s109, 1
      %p113 = scmp.eq.s32.totalorder %s16, 3
      %p114 = scmp.ne.s32.totalorder %s109, %s111
      %p115 = scmp.eq.s32.totalorder %s16, 0
      %p116 = por %p114, %p115
      %p117 = scmp.ne.s32.totalorder %s109, %s111
      %p118 = scmp.eq.s32.totalorder %s21, 3
      %p119 = por %p117, %p118
      %p120 = scmp.ne.s32.totalorder %s111, %s112
      %p121 = scmp.eq.s32.totalorder %s21, 0
      %p122 = por %p120, %p121
      %p123 = scmp.ne.s32.totalorder %s111, %s112
      %p124 = scmp.eq.s32.totalorder %s22, 3
      %p125 = por %p123, %p124
      %p127 = scmp.ne.s32.totalorder %s112, %s126
      %p128 = scmp.eq.s32.totalorder %s22, 0
      %p129 = por %p127, %p128
      %s131 = sadd.s32 %s130, 1
      %p134 = scmp.eq.s32.totalorder %s16, 3
      %p135 = scmp.ne.s32.totalorder %s130, %s132
      %p136 = scmp.eq.s32.totalorder %s16, 0
      %p137 = por %p135, %p136
      %p138 = scmp.ne.s32.totalorder %s130, %s132
      %p139 = scmp.eq.s32.totalorder %s21, 3
      %p140 = por %p138, %p139
      %p141 = scmp.ne.s32.totalorder %s132, %s133
      %p142 = scmp.eq.s32.totalorder %s21, 0
      %p143 = por %p141, %p142
      %p144 = scmp.ne.s32.totalorder %s132, %s133
      %p145 = scmp.eq.s32.totalorder %s22, 3
      %p146 = por %p144, %p145
      %p148 = scmp.ne.s32.totalorder %s133, %s147
      %p149 = scmp.eq.s32.totalorder %s22, 0
      %p150 = por %p148, %p149
      %s152 = sadd.s32 %s151, 1
      %p155 = scmp.eq.s32.totalorder %s16, 3
      %p156 = scmp.ne.s32.totalorder %s151, %s153
      %p157 = scmp.eq.s32.totalorder %s16, 0
      %p158 = por %p156, %p157
      %p159 = scmp.ne.s32.totalorder %s151, %s153
      %p160 = scmp.eq.s32.totalorder %s21, 3
      %p161 = por %p159, %p160
      %p162 = scmp.ne.s32.totalorder %s153, %s154
      %p163 = scmp.eq.s32.totalorder %s21, 0
      %p164 = por %p162, %p163
      %p165 = scmp.ne.s32.totalorder %s153, %s154
      %p166 = scmp.eq.s32.totalorder %s22, 3
      %p167 = por %p165, %p166
      %p169 = scmp.ne.s32.totalorder %s154, %s168
      %p170 = scmp.eq.s32.totalorder %s22, 0
      %p171 = por %p169, %p170
      %s173 = sadd.s32 %s172, 1
      %p176 = scmp.eq.s32.totalorder %s16, 3
      %p177 = scmp.ne.s32.totalorder %s172, %s174
      %p178 = scmp.eq.s32.totalorder %s16, 0
      %p179 = por %p177, %p178
      %p180 = scmp.ne.s32.totalorder %s172, %s174
      %p181 = scmp.eq.s32.totalorder %s21, 3
      %p182 = por %p180, %p181
      %p183 = scmp.ne.s32.totalorder %s174, %s175
      %p184 = scmp.eq.s32.totalorder %s21, 0
      %p185 = por %p183, %p184
      %p186 = scmp.ne.s32.totalorder %s174, %s175
      %p187 = scmp.eq.s32.totalorder %s22, 3
      %p188 = por %p186, %p187
      %p190 = scmp.ne.s32.totalorder %s175, %s189
      %p191 = scmp.eq.s32.totalorder %s22, 0
      %p192 = por %p190, %p191
      %s194 = sadd.s32 %s193, 1
      %p197 = scmp.eq.s32.totalorder %s16, 3
      %p198 = scmp.ne.s32.totalorder %s193, %s195
      %p199 = scmp.eq.s32.totalorder %s16, 0
      %p200 = por %p198, %p199
      %p201 = scmp.ne.s32.totalorder %s193, %s195
      %p202 = scmp.eq.s32.totalorder %s21, 3
      %p203 = por %p201, %p202
      %p204 = scmp.ne.s32.totalorder %s195, %s196
      %p205 = scmp.eq.s32.totalorder %s21, 0
      %p206 = por %p204, %p205
      %p207 = scmp.ne.s32.totalorder %s195, %s196
      %p208 = scmp.eq.s32.totalorder %s22, 3
      %p209 = por %p207, %p208
      %p211 = scmp.ne.s32.totalorder %s196, %s210
      %p212 = scmp.eq.s32.totalorder %s22, 0
      %p213 = por %p211, %p212
      %s214 = ssub.s32 %s24, %s31
      %p215 = scmp.eq.s32.totalorder %s214, 0
      %s217 = sadd.s32 %s216, 1
      %s218 = scalar_select %p215, %s216, %s217
      %p221 = pneg %p215
      %p222 = scmp.eq.s32.totalorder %s16, 3
      %p223 = por %p221, %p222
      %p224 = scmp.ne.s32.totalorder %s216, %s219
      %p225 = scmp.eq.s32.totalorder %s16, 0
      %p226 = por %p224, %p225
      %p227 = scmp.ne.s32.totalorder %s216, %s219
      %p228 = scmp.eq.s32.totalorder %s21, 3
      %p229 = por %p227, %p228
      %p230 = scmp.ne.s32.totalorder %s219, %s220
      %p231 = scmp.eq.s32.totalorder %s21, 0
      %p232 = por %p230, %p231
      %p233 = scmp.ne.s32.totalorder %s219, %s220
      %p234 = scmp.eq.s32.totalorder %s22, 3
      %p235 = por %p233, %p234
      %p237 = scmp.ne.s32.totalorder %s220, %s236
      %p238 = scmp.eq.s32.totalorder %s22, 0
      %p239 = por %p237, %p238
      %s240 = ssub.s32 %s24, %s31
      %p241 = scmp.eq.s32.totalorder %s240, 0
      %s243 = sadd.s32 %s242, 1
      %s244 = scalar_select %p241, %s242, %s243
      %p247 = pneg %p241
      %p248 = scmp.eq.s32.totalorder %s16, 3
      %p249 = por %p247, %p248
      %p250 = scmp.ne.s32.totalorder %s242, %s245
      %p251 = scmp.eq.s32.totalorder %s16, 0
      %p252 = por %p250, %p251
      %p253 = scmp.ne.s32.totalorder %s242, %s245
      %p254 = scmp.eq.s32.totalorder %s21, 3
      %p255 = por %p253, %p254
      %p256 = scmp.ne.s32.totalorder %s245, %s246
      %p257 = scmp.eq.s32.totalorder %s21, 0
      %p258 = por %p256, %p257
      %p259 = scmp.ne.s32.totalorder %s245, %s246
      %p260 = scmp.eq.s32.totalorder %s22, 3
      %p261 = por %p259, %p260
      %p263 = scmp.ne.s32.totalorder %s246, %s262
      %p264 = scmp.eq.s32.totalorder %s22, 0
      %p265 = por %p263, %p264
      %s266 = ssub.s32 %s23, %s35
      %s267 = ssub.s32 %s24, %s31
      %s268 = sor.u32 %s266, %s267
      %p269 = scmp.eq.s32.totalorder %s268, 0
      %s271 = sadd.s32 %s270, 1
      %s272 = scalar_select %p269, %s270, %s271
      %p275 = pneg %p269
      %p276 = scmp.eq.s32.totalorder %s16, 3
      %p277 = por %p275, %p276
      %p278 = scmp.ne.s32.totalorder %s270, %s273
      %p279 = scmp.eq.s32.totalorder %s16, 0
      %p280 = por %p278, %p279
      %p281 = scmp.ne.s32.totalorder %s270, %s273
      %p282 = scmp.eq.s32.totalorder %s21, 3
      %p283 = por %p281, %p282
      %p284 = scmp.ne.s32.totalorder %s273, %s274
      %p285 = scmp.eq.s32.totalorder %s21, 0
      %p286 = por %p284, %p285
      %p287 = scmp.ne.s32.totalorder %s273, %s274
      %p288 = scmp.eq.s32.totalorder %s22, 3
      %p289 = por %p287, %p288
      %p291 = scmp.ne.s32.totalorder %s274, %s290
      %p292 = scmp.eq.s32.totalorder %s22, 0
      %p293 = por %p291, %p292
      %p294 = scmp.le.s32.totalorder 1, %s16
      %p295 = scmp.lt.s32.totalorder %s16, 5
      %p296 = pnand %p294, %p295
      %p297 = pneg %p296
      // Predicated region
      $region9: #{cdae_forward.1} parent=5 // pred_check
        _
      $region10: #{cdae_forward.1} parent=5 // pred_check_branch
        %299 = sbr.rel (%p296) target = $region12
      $region11: #{cdae_forward.1} parent=5 // pred_region
        %s300 = ssub.s32 %s16, 1
        // Predicated region
        $region13: #{cdae_forward.1} parent=11 // pred_check
          %p301 = pneg %p101
        $region14: #{cdae_forward.1} parent=11 // pred_check_branch
          %303 = sbr.rel (%p301) target = $region16
        $region15: #{cdae_forward.1} parent=11 // pred_region
          _
        $region16: #{cdae_forward.1} parent=11 // pred_fallthru
          _
        // Predicated region
        $region17: #{cdae_forward.1} parent=11 // pred_check
          %p304 = pneg %p122
        $region18: #{cdae_forward.1} parent=11 // pred_check_branch
          %306 = sbr.rel (%p304) target = $region20
        $region19: #{cdae_forward.1} parent=11 // pred_region
          _
        $region20: #{cdae_forward.1} parent=11 // pred_fallthru
          _
        // Predicated region
        $region21: #{cdae_forward.1} parent=11 // pred_check
          %p307 = pneg %p143
        $region22: #{cdae_forward.1} parent=11 // pred_check_branch
          %309 = sbr.rel (%p307) target = $region24
        $region23: #{cdae_forward.1} parent=11 // pred_region
          _
        $region24: #{cdae_forward.1} parent=11 // pred_fallthru
          _
        // Predicated region
        $region25: #{cdae_forward.1} parent=11 // pred_check
          %p310 = pneg %p164
        $region26: #{cdae_forward.1} parent=11 // pred_check_branch
          %312 = sbr.rel (%p310) target = $region28
        $region27: #{cdae_forward.1} parent=11 // pred_region
          _
        $region28: #{cdae_forward.1} parent=11 // pred_fallthru
          _
        // Predicated region
        $region29: #{cdae_forward.1} parent=11 // pred_check
          %p313 = pneg %p185
        $region30: #{cdae_forward.1} parent=11 // pred_check_branch
          %315 = sbr.rel (%p313) target = $region32
        $region31: #{cdae_forward.1} parent=11 // pred_region
          _
        $region32: #{cdae_forward.1} parent=11 // pred_fallthru
          _
        // Predicated region
        $region33: #{cdae_forward.1} parent=11 // pred_check
          %p316 = pneg %p206
        $region34: #{cdae_forward.1} parent=11 // pred_check_branch
          %318 = sbr.rel (%p316) target = $region36
        $region35: #{cdae_forward.1} parent=11 // pred_region
          _
        $region36: #{cdae_forward.1} parent=11 // pred_fallthru
          _
      $region12: #{cdae_forward.1} parent=5 // pred_fallthru
        _
      %p319 = scmp.lt.s32.totalorder %s16, 4
      // Predicated region
      $region37: #{cdae_forward.1} parent=5 // pred_check
        %p320 = pneg %p319
      $region38: #{cdae_forward.1} parent=5 // pred_check_branch
        %322 = sbr.rel (%p320) target = $region40
      $region39: #{cdae_forward.1} parent=5 // pred_region
        // Predicated region
        $region41: #{cdae_forward.1} parent=39 // pred_check
          %p323 = pneg %p48
        $region42: #{cdae_forward.1} parent=39 // pred_check_branch
          %325 = sbr.rel (%p323) target = $region44
        $region43: #{cdae_forward.1} parent=39 // pred_region
          %s326 = smul.u32 2, %s23
          %p327 = scmp.lt.s32.totalorder %s326, 3
          %s328 = scalar_select %p327, %s326, 3
          %s329 = smul.addr %s328, 2
          %s330 = smul.addr %s329, 4
          %s331 = scalar_lea.vmem %s0, %s330
          %s332 = smul.u32 2, %s23
        $region44: #{cdae_forward.1} parent=39 // pred_fallthru
          _
        // Predicated region
        $region45: #{cdae_forward.1} parent=39 // pred_check
          %p333 = pneg %p74
        $region46: #{cdae_forward.1} parent=39 // pred_check_branch
          %335 = sbr.rel (%p333) target = $region48
        $region47: #{cdae_forward.1} parent=39 // pred_region
          %s336 = smul.u32 2, %s23
          %p337 = scmp.lt.s32.totalorder %s336, 3
          %s338 = scalar_select %p337, %s336, 3
          %s339 = smul.addr %s338, 8
          %s340 = scalar_lea.vmem %s1, %s339
          %s341 = smul.u32 2, %s23
        $region48: #{cdae_forward.1} parent=39 // pred_fallthru
          _
        // Predicated region
        $region49: #{cdae_forward.1} parent=39 // pred_check
          %p342 = pneg %p226
        $region50: #{cdae_forward.1} parent=39 // pred_check_branch
          %344 = sbr.rel (%p342) target = $region52
        $region51: #{cdae_forward.1} parent=39 // pred_region
          %s345 = sand.u32 %s216, 1
          %s346 = sand.u32 %s216, 1
          %s347 = smul.addr %s346, 64
          %s348 = scalar_lea.vmem [#allocation3], %s347
          %s349 = smul.addr %s24, 4
          %s350 = scalar_lea.vmem %s8, %s349
          // Predicated region
          $region53: #{cdae_forward.1} parent=51 // pred_check
            _
          $region54: #{cdae_forward.1} parent=51 // pred_check_branch
            %352 = sbr.rel (0) target = $region56
          $region55: #{cdae_forward.1} parent=51 // pred_region
            // Predicated region
            $region57: #{cdae_forward.1} parent=55 // pred_check
              _
            $region58: #{cdae_forward.1} parent=55 // pred_check_branch
              %354 = sbr.rel target = $region60
            $region59: #{cdae_forward.1} parent=55 // pred_region
              // Predicated region
              $region72: #{cdae_forward.1} parent=59 // pred_check
                _
              $region73: #{cdae_forward.1} parent=59 // pred_check_branch
                %399 = sbr.rel (0) target = $region75
              $region74: #{cdae_forward.1} parent=59 // pred_region
                loop: start=0, step=1, limit=1
                $region76: #{cdae_forward.1} parent=74 // loop_pre_header
                  _
                $region77: #{cdae_forward.1} parent=74 // loop_header
                  %s401 = sphi 0, %s405
                  %p402 = scmp.ge.s32.totalorder %s401, 1
                  %s406 = sphi %s350, %s350
                  %s407 = sphi %s348, %s348
                $region78: #{cdae_forward.1} parent=74 // loop_header_branch
                  %404 = sbr.rel (%p402) target = $region82
                $region79: #{cdae_forward.1} parent=74 // loop_body
                  _
                $region80: #{cdae_forward.1} parent=74 // loop_footer
                  %s405 = sadd.s32 1, %s401
                $region81: #{cdae_forward.1} parent=74 // loop_footer_branch
                  %400 = sbr.rel target = $region77
                $region82: #{cdae_forward.1} parent=74 // loop_exit
                  _
                loop: start=0, step=1, limit=1
                $region83: #{cdae_forward.1} parent=74 // loop_pre_header
                  _
                $region84: #{cdae_forward.1} parent=74 // loop_header
                  %s410 = sphi 0, %s414
                  %p411 = scmp.ge.s32.totalorder %s410, 1
                  %s415 = sphi %s350, %s350
                  %s416 = sphi %s348, %s348
                $region85: #{cdae_forward.1} parent=74 // loop_header_branch
                  %413 = sbr.rel (%p411) target = $region89
                $region86: #{cdae_forward.1} parent=74 // loop_body
                  %v417 = vld [vmem:[%s415] sm:$0xf]
                  %418 = vst [vmem:[%s416] sm:$0xf] %v417
                  %v419 = vld [vmem:[%s415 + $0x8] sm:$0xf]
                  %420 = vst [vmem:[%s416 + $0x4] sm:$0xf] %v419
                  %v421 = vld [vmem:[%s415 + $0x10] sm:$0xf]
                  %422 = vst [vmem:[%s416 + $0x8] sm:$0xf] %v421
                  %v423 = vld [vmem:[%s415 + $0x18] sm:$0xf]
                  %424 = vst [vmem:[%s416 + $0xc] sm:$0xf] %v423
                  %v425 = vld [vmem:[%s415 + $0x20] sm:$0xf]
                  %426 = vst [vmem:[%s416 + $0x10] sm:$0xf] %v425
                  %v427 = vld [vmem:[%s415 + $0x28] sm:$0xf]
                  %428 = vst [vmem:[%s416 + $0x14] sm:$0xf] %v427
                  %v429 = vld [vmem:[%s415 + $0x30] sm:$0xf]
                  %430 = vst [vmem:[%s416 + $0x18] sm:$0xf] %v429
                  %v431 = vld [vmem:[%s415 + $0x38] sm:$0xf]
                  %432 = vst [vmem:[%s416 + $0x1c] sm:$0xf] %v431
                  %v433 = vld [vmem:[%s415 + $0x40] sm:$0xf]
                  %434 = vst [vmem:[%s416 + $0x20] sm:$0xf] %v433
                  %v435 = vld [vmem:[%s415 + $0x48] sm:$0xf]
                  %436 = vst [vmem:[%s416 + $0x24] sm:$0xf] %v435
                  %v437 = vld [vmem:[%s415 + $0x50] sm:$0xf]
                  %438 = vst [vmem:[%s416 + $0x28] sm:$0xf] %v437
                  %v439 = vld [vmem:[%s415 + $0x58] sm:$0xf]
                  %440 = vst [vmem:[%s416 + $0x2c] sm:$0xf] %v439
                  %v441 = vld [vmem:[%s415 + $0x60] sm:$0xf]
                  %442 = vst [vmem:[%s416 + $0x30] sm:$0xf] %v441
                  %v443 = vld [vmem:[%s415 + $0x68] sm:$0xf]
                  %444 = vst [vmem:[%s416 + $0x34] sm:$0xf] %v443
                  %v445 = vld [vmem:[%s415 + $0x70] sm:$0xf]
                  %446 = vst [vmem:[%s416 + $0x38] sm:$0xf] %v445
                  %v447 = vld [vmem:[%s415 + $0x78] sm:$0xf]
                  %448 = vst [vmem:[%s416 + $0x3c] sm:$0xf] %v447
                $region87: #{cdae_forward.1} parent=74 // loop_footer
                  %s414 = sadd.s32 1, %s410
                $region88: #{cdae_forward.1} parent=74 // loop_footer_branch
                  %409 = sbr.rel target = $region84
                $region89: #{cdae_forward.1} parent=74 // loop_exit
                  _
              $region75: #{cdae_forward.1} parent=59 // pred_fallthru
                _
            $region60: #{cdae_forward.1} parent=55 // pred_fallthru
              _
            // Predicated region
            $region61: #{cdae_forward.1} parent=55 // pred_check
              _
            $region62: #{cdae_forward.1} parent=55 // pred_check_branch
              %356 = sbr.rel (0) target = $region64
            $region63: #{cdae_forward.1} parent=55 // pred_region
              loop: start=0, step=1, limit=1
              $region65: #{cdae_forward.1} parent=63 // loop_pre_header
                _
              $region66: #{cdae_forward.1} parent=63 // loop_header
                %s359 = sphi 0, %s363
                %p360 = scmp.ge.s32.totalorder %s359, 1
                %s364 = sphi %s350, %s350
                %s365 = sphi %s348, %s348
              $region67: #{cdae_forward.1} parent=63 // loop_header_branch
                %362 = sbr.rel (%p360) target = $region71
              $region68: #{cdae_forward.1} parent=63 // loop_body
                %v366 = vld [vmem:[%s364] sm:$0xf]
                %367 = vst [vmem:[%s365] sm:$0xf] %v366
                %v368 = vld [vmem:[%s364 + $0x8] sm:$0xf]
                %369 = vst [vmem:[%s365 + $0x4] sm:$0xf] %v368
                %v370 = vld [vmem:[%s364 + $0x10] sm:$0xf]
                %371 = vst [vmem:[%s365 + $0x8] sm:$0xf] %v370
                %v372 = vld [vmem:[%s364 + $0x18] sm:$0xf]
                %373 = vst [vmem:[%s365 + $0xc] sm:$0xf] %v372
                %v374 = vld [vmem:[%s364 + $0x20] sm:$0xf]
                %375 = vst [vmem:[%s365 + $0x10] sm:$0xf] %v374
                %v376 = vld [vmem:[%s364 + $0x28] sm:$0xf]
                %377 = vst [vmem:[%s365 + $0x14] sm:$0xf] %v376
                %v378 = vld [vmem:[%s364 + $0x30] sm:$0xf]
                %379 = vst [vmem:[%s365 + $0x18] sm:$0xf] %v378
                %v380 = vld [vmem:[%s364 + $0x38] sm:$0xf]
                %381 = vst [vmem:[%s365 + $0x1c] sm:$0xf] %v380
                %v382 = vld [vmem:[%s364 + $0x40] sm:$0xf]
                %383 = vst [vmem:[%s365 + $0x20] sm:$0xf] %v382
                %v384 = vld [vmem:[%s364 + $0x48] sm:$0xf]
                %385 = vst [vmem:[%s365 + $0x24] sm:$0xf] %v384
                %v386 = vld [vmem:[%s364 + $0x50] sm:$0xf]
                %387 = vst [vmem:[%s365 + $0x28] sm:$0xf] %v386
                %v388 = vld [vmem:[%s364 + $0x58] sm:$0xf]
                %389 = vst [vmem:[%s365 + $0x2c] sm:$0xf] %v388
                %v390 = vld [vmem:[%s364 + $0x60] sm:$0xf]
                %391 = vst [vmem:[%s365 + $0x30] sm:$0xf] %v390
                %v392 = vld [vmem:[%s364 + $0x68] sm:$0xf]
                %393 = vst [vmem:[%s365 + $0x34] sm:$0xf] %v392
                %v394 = vld [vmem:[%s364 + $0x70] sm:$0xf]
                %395 = vst [vmem:[%s365 + $0x38] sm:$0xf] %v394
                %v396 = vld [vmem:[%s364 + $0x78] sm:$0xf]
                %397 = vst [vmem:[%s365 + $0x3c] sm:$0xf] %v396
              $region69: #{cdae_forward.1} parent=63 // loop_footer
                %s363 = sadd.s32 1, %s359
              $region70: #{cdae_forward.1} parent=63 // loop_footer_branch
                %358 = sbr.rel target = $region66
              $region71: #{cdae_forward.1} parent=63 // loop_exit
                _
            $region64: #{cdae_forward.1} parent=55 // pred_fallthru
              _
          $region56: #{cdae_forward.1} parent=51 // pred_fallthru
            _
          %449 = vnop
        $region52: #{cdae_forward.1} parent=39 // pred_fallthru
          _
        // Predicated region
        $region90: #{cdae_forward.1} parent=39 // pred_check
          %p450 = pneg %p252
        $region91: #{cdae_forward.1} parent=39 // pred_check_branch
          %452 = sbr.rel (%p450) target = $region93
        $region92: #{cdae_forward.1} parent=39 // pred_region
          %p453 = scmp.lt.s32.totalorder %s24, 1
          %s454 = scalar_select %p453, %s24, 1
          %s455 = scalar_lea.vmem %s9, %s454
        $region93: #{cdae_forward.1} parent=39 // pred_fallthru
          _
      $region40: #{cdae_forward.1} parent=5 // pred_fallthru
        _
      %p456 = scmp.le.s32.totalorder 1, %s16
      %p457 = scmp.lt.s32.totalorder %s16, 5
      %p458 = pnand %p456, %p457
      %p459 = pneg %p458
      // Predicated region
      $region94: #{cdae_forward.1} parent=5 // pred_check
        _
      $region95: #{cdae_forward.1} parent=5 // pred_check_branch
        %461 = sbr.rel (%p458) target = $region97
      $region96: #{cdae_forward.1} parent=5 // pred_region
        %s462 = ssub.s32 %s16, 1
        %s463 = sand.u32 %s219, 1
        %s464 = sand.u32 %s219, 1
        %s465 = smul.addr %s464, 64
        %s466 = scalar_lea.vmem [#allocation3], %s465
        // Predicated region
        $region98: #{cdae_forward.1} parent=96 // pred_check
          %p467 = pneg %p232
        $region99: #{cdae_forward.1} parent=96 // pred_check_branch
          %469 = sbr.rel (%p467) target = $region101
        $region100: #{cdae_forward.1} parent=96 // pred_region
          _
        $region101: #{cdae_forward.1} parent=96 // pred_fallthru
          _
        %s470 = smul.u32 2, %s25
        %p471 = scmp.lt.s32.totalorder %s470, 3
        %s472 = scalar_select %p471, %s470, 3
        %s473 = smul.addr %s472, 2
        %s474 = smul.addr %s473, 4
        %s475 = scalar_lea.vmem %s0, %s474
        %p476 = pneg %p54
        %p477 = pneg %p51
        %s478 = smul.u32 2, %s25
        %p479 = scmp.lt.s32.totalorder %s478, 3
        %s480 = scalar_select %p479, %s478, 3
        %s481 = smul.addr %s480, 8
        %s482 = scalar_lea.vmem %s1, %s481
        %p483 = pneg %p80
        %p484 = pneg %p77
        %p485 = pneg %p101
        %p486 = pneg %p98
        %p487 = pneg %p122
        %p488 = pneg %p119
        %p489 = pneg %p143
        %p490 = pneg %p140
        %p491 = pneg %p164
        %p492 = pneg %p161
        %p493 = pneg %p185
        %p494 = pneg %p182
        %p495 = pneg %p206
        %p496 = pneg %p203
        %s497 = sand.u32 %s219, 1
        %s498 = sand.u32 %s219, 1
        %s499 = smul.addr %s498, 64
        %s500 = scalar_lea.vmem [#allocation3], %s499
        %p501 = pneg %p232
        %p502 = pneg %p229
        %p503 = scmp.lt.s32.totalorder %s26, 1
        %s504 = scalar_select %p503, %s26, 1
        %s505 = scalar_lea.vmem %s9, %s504
        %p506 = pneg %p258
        %p507 = pneg %p255
        %p508 = pneg %p286
        %p509 = pneg %p283
        %s510 = sand.u32 %s273, 1
        %s511 = sand.u32 %s273, 1
        %s512 = smul.addr %s511, 16
        %s513 = scalar_lea.vmem [#allocation4], %s512
        %s514 = smul.u32 2, %s25
        %p515 = scmp.lt.s32.totalorder %s514, 3
        %s516 = scalar_select %p515, %s514, 3
        %s517 = smul.addr %s516, 2
        %s518 = smul.addr %s517, 4
        %s519 = scalar_lea.vmem %s0, %s518
        %s520 = smul.u32 2, %s25
        %s521 = smul.u32 2, %s25
        %p522 = scmp.lt.s32.totalorder %s521, 3
        %s523 = scalar_select %p522, %s521, 3
        %s524 = smul.addr %s523, 8
        %s525 = scalar_lea.vmem %s1, %s524
        %s526 = smul.u32 2, %s25
        %p527 = scmp.lt.s32.totalorder %s26, 1
        %s528 = scalar_select %p527, %s26, 1
        %s529 = scalar_lea.vmem %s9, %s528
        %s530 = smul.u32 2, %s25
        %p532 = scmp.eq.s32.totalorder %s26, 0
        // Predicated region
        $region102: #{cdae_forward.1} parent=96 // pred_check
          %p533 = pneg %p532
        $region103: #{cdae_forward.1} parent=96 // pred_check_branch
          %535 = sbr.rel (%p533) target = $region105
        $region104: #{cdae_forward.1} parent=96 // pred_region
          %v536 = vld [vmem:[%s519] sm:$0xff]
          %v537 = vld [vmem:[%s519 + $0x8] sm:$0xff]
          %v538 = vld [vmem:[%s2] sm:$0xf]
          %v539 = vld [vmem:[%s2 + $0x4] sm:$0xf]
          %v540 = vld [vmem:[%s2 + $0x8] sm:$0xf]
          %v541 = vld [vmem:[%s2 + $0xc] sm:$0xf]
          %v542 = vld [vmem:[%s2 + $0x10] sm:$0xf]
          %v543 = vld [vmem:[%s2 + $0x14] sm:$0xf]
          %v544 = vld [vmem:[%s2 + $0x18] sm:$0xf]
          %v545 = vld [vmem:[%s2 + $0x1c] sm:$0xf]
          %v546 = vld [vmem:[%s2 + $0x20] sm:$0xf]
          %v547 = vld [vmem:[%s2 + $0x24] sm:$0xf]
          %v548 = vld [vmem:[%s2 + $0x28] sm:$0xf]
          %v549 = vld [vmem:[%s2 + $0x2c] sm:$0xf]
          %v550 = vld [vmem:[%s2 + $0x30] sm:$0xf]
          %v551 = vld [vmem:[%s2 + $0x34] sm:$0xf]
          %v552 = vld [vmem:[%s2 + $0x38] sm:$0xf]
          %v553 = vld [vmem:[%s2 + $0x3c] sm:$0xf]
          %v554 = vld [vmem:[%s2 + $0x40] sm:$0xf]
          %v555 = vld [vmem:[%s2 + $0x44] sm:$0xf]
          %v556 = vld [vmem:[%s2 + $0x48] sm:$0xf]
          %v557 = vld [vmem:[%s2 + $0x4c] sm:$0xf]
          %v558 = vld [vmem:[%s2 + $0x50] sm:$0xf]
          %v559 = vld [vmem:[%s2 + $0x54] sm:$0xf]
          %v560 = vld [vmem:[%s2 + $0x58] sm:$0xf]
          %v561 = vld [vmem:[%s2 + $0x5c] sm:$0xf]
          %v562 = vld [vmem:[%s2 + $0x60] sm:$0xf]
          %v563 = vld [vmem:[%s2 + $0x64] sm:$0xf]
          %v564 = vld [vmem:[%s2 + $0x68] sm:$0xf]
          %v565 = vld [vmem:[%s2 + $0x6c] sm:$0xf]
          %v566 = vld [vmem:[%s2 + $0x70] sm:$0xf]
          %v567 = vld [vmem:[%s2 + $0x74] sm:$0xf]
          %v568 = vld [vmem:[%s2 + $0x78] sm:$0xf]
          %v569 = vld [vmem:[%s2 + $0x7c] sm:$0xf]
          %v570 = vld [vmem:[%s3] sm:$0x1]
          %v572 = vlaneseq
          %v573 = vshrl.u32 %v572, 7
          %v574 = vsub.s32 0, %v573
          %v575 = vrot.slane %v570, %v574
          %v579 = vunpack.c.l.b16 %v536
          %v580 = vunpack.c.h.b16 %v536
          %v581 = vunpack.c.l.b16 %v537
          %v582 = vunpack.c.h.b16 %v537
          %v583 = vpack.c.b16 %v581, %v579
          %v584 = vpack.c.b16 %v582, %v580
          %v619 = vunpack.c.l.b16 %v538
          %v620 = vunpack.c.l.b16 %v539
          %v621 = vunpack.c.l.b16 %v540
          %v622 = vunpack.c.l.b16 %v541
          %v623 = vunpack.c.l.b16 %v542
          %v624 = vunpack.c.l.b16 %v543
          %v625 = vunpack.c.l.b16 %v544
          %v626 = vunpack.c.l.b16 %v545
          %v627 = vunpack.c.l.b16 %v546
          %v628 = vunpack.c.l.b16 %v547
          %v629 = vunpack.c.l.b16 %v548
          %v630 = vunpack.c.l.b16 %v549
          %v631 = vunpack.c.l.b16 %v550
          %v632 = vunpack.c.l.b16 %v551
          %v633 = vunpack.c.l.b16 %v552
          %v634 = vunpack.c.l.b16 %v553
          %v635 = vunpack.c.l.b16 %v554
          %v636 = vunpack.c.l.b16 %v555
          %v637 = vunpack.c.l.b16 %v556
          %v638 = vunpack.c.l.b16 %v557
          %v639 = vunpack.c.l.b16 %v558
          %v640 = vunpack.c.l.b16 %v559
          %v641 = vunpack.c.l.b16 %v560
          %v642 = vunpack.c.l.b16 %v561
          %v643 = vunpack.c.l.b16 %v562
          %v644 = vunpack.c.l.b16 %v563
          %v645 = vunpack.c.l.b16 %v564
          %v646 = vunpack.c.l.b16 %v565
          %v647 = vunpack.c.l.b16 %v566
          %v648 = vunpack.c.l.b16 %v567
          %v649 = vunpack.c.l.b16 %v568
          %v650 = vunpack.c.l.b16 %v569
          %v651 = vpack.c.b16 %v620, %v619
          %v652 = vpack.c.b16 %v622, %v621
          %v653 = vpack.c.b16 %v624, %v623
          %v654 = vpack.c.b16 %v626, %v625
          %v655 = vpack.c.b16 %v628, %v627
          %v656 = vpack.c.b16 %v630, %v629
          %v657 = vpack.c.b16 %v632, %v631
          %v658 = vpack.c.b16 %v634, %v633
          %v659 = vpack.c.b16 %v636, %v635
          %v660 = vpack.c.b16 %v638, %v637
          %v661 = vpack.c.b16 %v640, %v639
          %v662 = vpack.c.b16 %v642, %v641
          %v663 = vpack.c.b16 %v644, %v643
          %v664 = vpack.c.b16 %v646, %v645
          %v665 = vpack.c.b16 %v648, %v647
          %v666 = vpack.c.b16 %v650, %v649
          %683 = vmatprep.subr.bf16.mxu0 0
          %684 = vmatpush1.bf16.msra.mxu0 %v651
          %685 = vmatprep.subr.bf16.mxu0 0
          %686 = vmatpush1.bf16.msra.mxu0 %v652
          %687 = vmatprep.subr.bf16.mxu0 0
          %688 = vmatpush1.bf16.msra.mxu0 %v653
          %689 = vmatprep.subr.bf16.mxu0 0
          %690 = vmatpush1.bf16.msra.mxu0 %v654
          %691 = vmatprep.subr.bf16.mxu0 0
          %692 = vmatpush1.bf16.msra.mxu0 %v655
          %693 = vmatprep.subr.bf16.mxu0 0
          %694 = vmatpush1.bf16.msra.mxu0 %v656
          %695 = vmatprep.subr.bf16.mxu0 0
          %696 = vmatpush1.bf16.msra.mxu0 %v657
          %697 = vmatprep.subr.bf16.mxu0 0
          %698 = vmatpush1.bf16.msra.mxu0 %v658
          %699 = vmatprep.subr.bf16.mxu0 0
          %700 = vmatpush1.bf16.msra.mxu0 %v659
          %701 = vmatprep.subr.bf16.mxu0 0
          %702 = vmatpush1.bf16.msra.mxu0 %v660
          %703 = vmatprep.subr.bf16.mxu0 0
          %704 = vmatpush1.bf16.msra.mxu0 %v661
          %705 = vmatprep.subr.bf16.mxu0 0
          %706 = vmatpush1.bf16.msra.mxu0 %v662
          %707 = vmatprep.subr.bf16.mxu0 0
          %708 = vmatpush1.bf16.msra.mxu0 %v663
          %709 = vmatprep.subr.bf16.mxu0 0
          %710 = vmatpush1.bf16.msra.mxu0 %v664
          %711 = vmatprep.subr.bf16.mxu0 0
          %712 = vmatpush1.bf16.msra.mxu0 %v665
          %713 = vmatprep.subr.bf16.mxu0 0
          %714 = vmatpush1.bf16.msra.mxu0 %v666
          %715 = vmatprep.mubr.bf16.mxu0 %v584
          %716 = vmatmul.mubr.bf16.gmra.mrb[0].mxu0 %v583
          %v717 = vpop.f32.mrb[0].mxu0
          %v718 = vadd.f32 %v575, %v717
          %v719 = vpop.f32.mrb[0].mxu0
          %v720 = vpop.f32.mrb[0].mxu0
          %v721 = vadd.f32 %v575, %v720
          %v722 = vpop.f32.mrb[0].mxu0
          %723 = vdwg.mxu0
          %v724 = vxor.u32 %v718, 2147483648
          %v725 = vxor.u32 %v721, 2147483648
          %v726 = vmul.f32 %v724, 1.442695
          %v727 = vpow.pop %v726
          %v728 = vmul.f32 %v725, 1.442695
          %v729 = vpow.pop %v728
          %v730 = vadd.f32 %v727, 1.0
          %v731 = vadd.f32 %v729, 1.0
          %v732 = vrcp.pop %v730
          %v733 = vmul.f32 1.0, %v732
          %v734 = vrcp.pop %v731
          %v735 = vmul.f32 1.0, %v734
          %v736 = vmul.f32 %v718, %v733
          %v737 = vmul.f32 %v721, %v735
          %v738 = vpack.c.bf16 %v737, %v736
          %v739 = vld [vmem:[%s4] sm:$0xf]
          %v740 = vld [vmem:[%s4 + $0x4] sm:$0xf]
          %v741 = vld [vmem:[%s4 + $0x8] sm:$0xf]
          %v742 = vld [vmem:[%s4 + $0xc] sm:$0xf]
          %v743 = vld [vmem:[%s4 + $0x10] sm:$0xf]
          %v744 = vld [vmem:[%s4 + $0x14] sm:$0xf]
          %v745 = vld [vmem:[%s4 + $0x18] sm:$0xf]
          %v746 = vld [vmem:[%s4 + $0x1c] sm:$0xf]
          %v747 = vld [vmem:[%s4 + $0x20] sm:$0xf]
          %v748 = vld [vmem:[%s4 + $0x24] sm:$0xf]
          %v749 = vld [vmem:[%s4 + $0x28] sm:$0xf]
          %v750 = vld [vmem:[%s4 + $0x2c] sm:$0xf]
          %v751 = vld [vmem:[%s4 + $0x30] sm:$0xf]
          %v752 = vld [vmem:[%s4 + $0x34] sm:$0xf]
          %v753 = vld [vmem:[%s4 + $0x38] sm:$0xf]
          %v754 = vld [vmem:[%s4 + $0x3c] sm:$0xf]
          %v755 = vld [vmem:[%s5] sm:$0x1]
          %v757 = vlaneseq
          %v758 = vshrl.u32 %v757, 7
          %v759 = vsub.s32 0, %v758
          %v760 = vrot.slane %v755, %v759
          %v778 = vunpack.c.l.b16 %v739
          %v779 = vunpack.c.l.b16 %v740
          %v780 = vunpack.c.l.b16 %v741
          %v781 = vunpack.c.l.b16 %v742
          %v782 = vunpack.c.l.b16 %v743
          %v783 = vunpack.c.l.b16 %v744
          %v784 = vunpack.c.l.b16 %v745
          %v785 = vunpack.c.l.b16 %v746
          %v786 = vunpack.c.l.b16 %v747
          %v787 = vunpack.c.l.b16 %v748
          %v788 = vunpack.c.l.b16 %v749
          %v789 = vunpack.c.l.b16 %v750
          %v790 = vunpack.c.l.b16 %v751
          %v791 = vunpack.c.l.b16 %v752
          %v792 = vunpack.c.l.b16 %v753
          %v793 = vunpack.c.l.b16 %v754
          %v794 = vpack.c.b16 %v779, %v778
          %v795 = vpack.c.b16 %v781, %v780
          %v796 = vpack.c.b16 %v783, %v782
          %v797 = vpack.c.b16 %v785, %v784
          %v798 = vpack.c.b16 %v787, %v786
          %v799 = vpack.c.b16 %v789, %v788
          %v800 = vpack.c.b16 %v791, %v790
          %v801 = vpack.c.b16 %v793, %v792
          %810 = vmatprep.subr.bf16.mxu0 0
          %811 = vmatpush1.bf16.msra.mxu0 %v794
          %812 = vmatprep.subr.bf16.mxu0 0
          %813 = vmatpush1.bf16.msra.mxu0 %v795
          %814 = vmatprep.subr.bf16.mxu0 0
          %815 = vmatpush1.bf16.msra.mxu0 %v796
          %816 = vmatprep.subr.bf16.mxu0 0
          %817 = vmatpush1.bf16.msra.mxu0 %v797
          %818 = vmatprep.subr.bf16.mxu0 0
          %819 = vmatpush1.bf16.msra.mxu0 %v798
          %820 = vmatprep.subr.bf16.mxu0 0
          %821 = vmatpush1.bf16.msra.mxu0 %v799
          %822 = vmatprep.subr.bf16.mxu0 0
          %823 = vmatpush1.bf16.msra.mxu0 %v800
          %824 = vmatprep.subr.bf16.mxu0 0
          %825 = vmatpush1.bf16.msra.mxu0 %v801
          %826 = vmatprep.subr.bf16.mxu0 0
          %827 = vmatpush1.bf16.msra.mxu0 0
          %828 = vmatprep.subr.bf16.mxu0 0
          %829 = vmatpush1.bf16.msra.mxu0 0
          %830 = vmatprep.subr.bf16.mxu0 0
          %831 = vmatpush1.bf16.msra.mxu0 0
          %832 = vmatprep.subr.bf16.mxu0 0
          %833 = vmatpush1.bf16.msra.mxu0 0
          %834 = vmatprep.subr.bf16.mxu0 0
          %835 = vmatpush1.bf16.msra.mxu0 0
          %836 = vmatprep.subr.bf16.mxu0 0
          %837 = vmatpush1.bf16.msra.mxu0 0
          %838 = vmatprep.subr.bf16.mxu0 0
          %839 = vmatpush1.bf16.msra.mxu0 0
          %840 = vmatprep.subr.bf16.mxu0 0
          %841 = vmatpush1.bf16.msra.mxu0 0
          %842 = vmatprep.mubr.bf16.mxu0 0
          %843 = vmatmul.mubr.bf16.gmra.mrb[0].mxu0 %v738
          %v844 = vpop.f32.mrb[0].mxu0
          %v845 = vadd.f32 %v760, %v844
          %v846 = vpop.f32.mrb[0].mxu0
          %v847 = vpop.f32.mrb[0].mxu0
          %v848 = vadd.f32 %v760, %v847
          %v849 = vpop.f32.mrb[0].mxu0
          %850 = vdwg.mxu0
          %v851 = vxor.u32 %v845, 2147483648
          %v852 = vxor.u32 %v848, 2147483648
          %v853 = vmul.f32 %v851, 1.442695
          %v854 = vpow.pop %v853
          %v855 = vmul.f32 %v852, 1.442695
          %v856 = vpow.pop %v855
          %v857 = vadd.f32 %v854, 1.0
          %v858 = vadd.f32 %v856, 1.0
          %v859 = vrcp.pop %v857
          %v860 = vmul.f32 1.0, %v859
          %v861 = vrcp.pop %v858
          %v862 = vmul.f32 1.0, %v861
          %v863 = vmul.f32 %v845, %v860
          %v864 = vmul.f32 %v848, %v862
          %v865 = vld [vmem:[%s525] sm:$0xff]
          %v866 = vld [vmem:[%s525 + $0x8] sm:$0xff]
          %v867 = vadd.f32 %v863, %v865
          %v868 = vadd.f32 %v864, %v866
          %v869 = vpack.c.bf16 %v868, %v867
          %v870 = vld [vmem:[%s6] sm:$0xf]
          %v871 = vld [vmem:[%s6 + $0x4] sm:$0xf]
          %v872 = vld [vmem:[%s6 + $0x8] sm:$0xf]
          %v873 = vld [vmem:[%s6 + $0xc] sm:$0xf]
          %v874 = vld [vmem:[%s6 + $0x10] sm:$0xf]
          %v875 = vld [vmem:[%s6 + $0x14] sm:$0xf]
          %v876 = vld [vmem:[%s6 + $0x18] sm:$0xf]
          %v877 = vld [vmem:[%s6 + $0x1c] sm:$0xf]
          %v878 = vld [vmem:[%s6 + $0x20] sm:$0xf]
          %v879 = vld [vmem:[%s6 + $0x24] sm:$0xf]
          %v880 = vld [vmem:[%s6 + $0x28] sm:$0xf]
          %v881 = vld [vmem:[%s6 + $0x2c] sm:$0xf]
          %v882 = vld [vmem:[%s6 + $0x30] sm:$0xf]
          %v883 = vld [vmem:[%s6 + $0x34] sm:$0xf]
          %v884 = vld [vmem:[%s6 + $0x38] sm:$0xf]
          %v885 = vld [vmem:[%s6 + $0x3c] sm:$0xf]
          %v886 = vld [vmem:[%s7] sm:$0x1]
          %v888 = vlaneseq
          %v889 = vshrl.u32 %v888, 7
          %v890 = vsub.s32 0, %v889
          %v891 = vrot.slane %v886, %v890
          %v909 = vunpack.c.l.b16 %v870
          %v910 = vunpack.c.l.b16 %v871
          %v911 = vunpack.c.l.b16 %v872
          %v912 = vunpack.c.l.b16 %v873
          %v913 = vunpack.c.l.b16 %v874
          %v914 = vunpack.c.l.b16 %v875
          %v915 = vunpack.c.l.b16 %v876
          %v916 = vunpack.c.l.b16 %v877
          %v917 = vunpack.c.l.b16 %v878
          %v918 = vunpack.c.l.b16 %v879
          %v919 = vunpack.c.l.b16 %v880
          %v920 = vunpack.c.l.b16 %v881
          %v921 = vunpack.c.l.b16 %v882
          %v922 = vunpack.c.l.b16 %v883
          %v923 = vunpack.c.l.b16 %v884
          %v924 = vunpack.c.l.b16 %v885
          %v925 = vpack.c.b16 %v910, %v909
          %v926 = vpack.c.b16 %v912, %v911
          %v927 = vpack.c.b16 %v914, %v913
          %v928 = vpack.c.b16 %v916, %v915
          %v929 = vpack.c.b16 %v918, %v917
          %v930 = vpack.c.b16 %v920, %v919
          %v931 = vpack.c.b16 %v922, %v921
          %v932 = vpack.c.b16 %v924, %v923
          %941 = vmatprep.subr.bf16.mxu0 0
          %942 = vmatpush1.bf16.msra.mxu0 %v925
          %943 = vmatprep.subr.bf16.mxu0 0
          %944 = vmatpush1.bf16.msra.mxu0 %v926
          %945 = vmatprep.subr.bf16.mxu0 0
          %946 = vmatpush1.bf16.msra.mxu0 %v927
          %947 = vmatprep.subr.bf16.mxu0 0
          %948 = vmatpush1.bf16.msra.mxu0 %v928
          %949 = vmatprep.subr.bf16.mxu0 0
          %950 = vmatpush1.bf16.msra.mxu0 %v929
          %951 = vmatprep.subr.bf16.mxu0 0
          %952 = vmatpush1.bf16.msra.mxu0 %v930
          %953 = vmatprep.subr.bf16.mxu0 0
          %954 = vmatpush1.bf16.msra.mxu0 %v931
          %955 = vmatprep.subr.bf16.mxu0 0
          %956 = vmatpush1.bf16.msra.mxu0 %v932
          %957 = vmatprep.subr.bf16.mxu0 0
          %958 = vmatpush1.bf16.msra.mxu0 0
          %959 = vmatprep.subr.bf16.mxu0 0
          %960 = vmatpush1.bf16.msra.mxu0 0
          %961 = vmatprep.subr.bf16.mxu0 0
          %962 = vmatpush1.bf16.msra.mxu0 0
          %963 = vmatprep.subr.bf16.mxu0 0
          %964 = vmatpush1.bf16.msra.mxu0 0
          %965 = vmatprep.subr.bf16.mxu0 0
          %966 = vmatpush1.bf16.msra.mxu0 0
          %967 = vmatprep.subr.bf16.mxu0 0
          %968 = vmatpush1.bf16.msra.mxu0 0
          %969 = vmatprep.subr.bf16.mxu0 0
          %970 = vmatpush1.bf16.msra.mxu0 0
          %971 = vmatprep.subr.bf16.mxu0 0
          %972 = vmatpush1.bf16.msra.mxu0 0
          %973 = vmatprep.mubr.bf16.mxu0 0
          %974 = vmatmul.mubr.bf16.gmra.mrb[0].mxu0 %v869
          %v975 = vpop.f32.mrb[0].mxu0
          %v976 = vadd.f32 %v891, %v975
          %v977 = vpop.f32.mrb[0].mxu0
          %v978 = vpop.f32.mrb[0].mxu0
          %v979 = vadd.f32 %v891, %v978
          %v980 = vpop.f32.mrb[0].mxu0
          %981 = vdwg.mxu0
          %vm982 = vcmp.gt.f32.partialorder %v976, 0.0
          %vm983 = vcmp.gt.f32.partialorder %v979, 0.0
          %v984 = vmin.f32 %v976, 0.0
          %v985 = vmin.f32 %v979, 0.0
          %v986 = vmul.f32 %v984, 1.442695
          %v987 = vpow.pop %v986
          %v988 = vmul.f32 %v985, 1.442695
          %v989 = vpow.pop %v988
          %v990 = vsub.f32 %v987, 1.0
          %v991 = vsub.f32 %v989, 1.0
          %v992 = vmul.f32 %v990, 1.6732632
          %v993 = vmul.f32 %v991, 1.6732632
          %v994 = vsel %vm982, %v976, %v992
          %v995 = vsel %vm983, %v979, %v993
          %v996 = vmul.f32 %v994, 1.050701
          %v997 = vmul.f32 %v995, 1.050701
          %v998 = vpack.c.bf16 %v997, %v996
          %999 = vst [vmem:[#allocation2] sm:$0xff] %v998
        $region105: #{cdae_forward.1} parent=96 // pred_fallthru
          _
        %v1000 = vld [vmem:[#allocation2] sm:$0xff]
        %v1001 = vld [vmem:[%s466] sm:$0xf]
        %v1002 = vld [vmem:[%s466 + $0x4] sm:$0xf]
        %v1003 = vld [vmem:[%s466 + $0x8] sm:$0xf]
        %v1004 = vld [vmem:[%s466 + $0xc] sm:$0xf]
        %v1005 = vld [vmem:[%s466 + $0x10] sm:$0xf]
        %v1006 = vld [vmem:[%s466 + $0x14] sm:$0xf]
        %v1007 = vld [vmem:[%s466 + $0x18] sm:$0xf]
        %v1008 = vld [vmem:[%s466 + $0x1c] sm:$0xf]
        %v1009 = vld [vmem:[%s466 + $0x20] sm:$0xf]
        %v1010 = vld [vmem:[%s466 + $0x24] sm:$0xf]
        %v1011 = vld [vmem:[%s466 + $0x28] sm:$0xf]
        %v1012 = vld [vmem:[%s466 + $0x2c] sm:$0xf]
        %v1013 = vld [vmem:[%s466 + $0x30] sm:$0xf]
        %v1014 = vld [vmem:[%s466 + $0x34] sm:$0xf]
        %v1015 = vld [vmem:[%s466 + $0x38] sm:$0xf]
        %v1016 = vld [vmem:[%s466 + $0x3c] sm:$0xf]
        %v1017 = vld [vmem:[%s529] sm:$0x1]
        %v1019 = vlaneseq
        %v1020 = vshrl.u32 %v1019, 7
        %v1021 = vsub.s32 0, %v1020
        %v1022 = vrot.slane %v1017, %v1021
        %v1040 = vunpack.c.l.b16 %v1001
        %v1041 = vunpack.c.l.b16 %v1002
        %v1042 = vunpack.c.l.b16 %v1003
        %v1043 = vunpack.c.l.b16 %v1004
        %v1044 = vunpack.c.l.b16 %v1005
        %v1045 = vunpack.c.l.b16 %v1006
        %v1046 = vunpack.c.l.b16 %v1007
        %v1047 = vunpack.c.l.b16 %v1008
        %v1048 = vunpack.c.l.b16 %v1009
        %v1049 = vunpack.c.l.b16 %v1010
        %v1050 = vunpack.c.l.b16 %v1011
        %v1051 = vunpack.c.l.b16 %v1012
        %v1052 = vunpack.c.l.b16 %v1013
        %v1053 = vunpack.c.l.b16 %v1014
        %v1054 = vunpack.c.l.b16 %v1015
        %v1055 = vunpack.c.l.b16 %v1016
        %v1056 = vpack.c.b16 %v1041, %v1040
        %v1057 = vpack.c.b16 %v1043, %v1042
        %v1058 = vpack.c.b16 %v1045, %v1044
        %v1059 = vpack.c.b16 %v1047, %v1046
        %v1060 = vpack.c.b16 %v1049, %v1048
        %v1061 = vpack.c.b16 %v1051, %v1050
        %v1062 = vpack.c.b16 %v1053, %v1052
        %v1063 = vpack.c.b16 %v1055, %v1054
        %1072 = vmatprep.subr.bf16.mxu0 0
        %1073 = vmatpush1.bf16.msra.mxu0 %v1056
        %1074 = vmatprep.subr.bf16.mxu0 0
        %1075 = vmatpush1.bf16.msra.mxu0 %v1057
        %1076 = vmatprep.subr.bf16.mxu0 0
        %1077 = vmatpush1.bf16.msra.mxu0 %v1058
        %1078 = vmatprep.subr.bf16.mxu0 0
        %1079 = vmatpush1.bf16.msra.mxu0 %v1059
        %1080 = vmatprep.subr.bf16.mxu0 0
        %1081 = vmatpush1.bf16.msra.mxu0 %v1060
        %1082 = vmatprep.subr.bf16.mxu0 0
        %1083 = vmatpush1.bf16.msra.mxu0 %v1061
        %1084 = vmatprep.subr.bf16.mxu0 0
        %1085 = vmatpush1.bf16.msra.mxu0 %v1062
        %1086 = vmatprep.subr.bf16.mxu0 0
        %1087 = vmatpush1.bf16.msra.mxu0 %v1063
        %1088 = vmatprep.subr.bf16.mxu0 0
        %1089 = vmatpush1.bf16.msra.mxu0 0
        %1090 = vmatprep.subr.bf16.mxu0 0
        %1091 = vmatpush1.bf16.msra.mxu0 0
        %1092 = vmatprep.subr.bf16.mxu0 0
        %1093 = vmatpush1.bf16.msra.mxu0 0
        %1094 = vmatprep.subr.bf16.mxu0 0
        %1095 = vmatpush1.bf16.msra.mxu0 0
        %1096 = vmatprep.subr.bf16.mxu0 0
        %1097 = vmatpush1.bf16.msra.mxu0 0
        %1098 = vmatprep.subr.bf16.mxu0 0
        %1099 = vmatpush1.bf16.msra.mxu0 0
        %1100 = vmatprep.subr.bf16.mxu0 0
        %1101 = vmatpush1.bf16.msra.mxu0 0
        %1102 = vmatprep.subr.bf16.mxu0 0
        %1103 = vmatpush1.bf16.msra.mxu0 0
        %1104 = vmatprep.mubr.bf16.mxu0 0
        %1105 = vmatmul.mubr.bf16.gmra.mrb[0].mxu0 %v1000
        %v1106 = vpop.f32.mrb[0].mxu0
        %v1107 = vadd.f32 %v1022, %v1106
        %v1108 = vpop.f32.mrb[0].mxu0
        %v1109 = vpop.f32.mrb[0].mxu0
        %v1110 = vadd.f32 %v1022, %v1109
        %v1111 = vpop.f32.mrb[0].mxu0
        %1112 = vdwg.mxu0
        %1113 = vst [vmem:[%s513] sm:$0xff] %v1107
        %1114 = vst [vmem:[%s513 + $0x8] sm:$0xff] %v1110
        %s1115 = sand.u32 %s273, 1
        %s1116 = sand.u32 %s273, 1
        %s1117 = smul.addr %s1116, 16
        %s1118 = scalar_lea.vmem [#allocation4], %s1117
        // Predicated region
        $region106: #{cdae_forward.1} parent=96 // pred_check
          %p1119 = pneg %p283
        $region107: #{cdae_forward.1} parent=96 // pred_check_branch
          %1121 = sbr.rel (%p1119) target = $region109
        $region108: #{cdae_forward.1} parent=96 // pred_region
          %s1122 = smul.u32 2, %s25
          %s1123 = smul.addr %s1122, 2
          %s1124 = sadd.s32 %s26, %s1123
          %s1125 = smul.addr %s1124, 8
          %s1126 = scalar_lea.vmem %s10, %s1125
          // Predicated region
          $region110: #{cdae_forward.1} parent=108 // pred_check
            _
          $region111: #{cdae_forward.1} parent=108 // pred_check_branch
            %1128 = sbr.rel (0) target = $region113
          $region112: #{cdae_forward.1} parent=108 // pred_region
            // Predicated region
            $region114: #{cdae_forward.1} parent=112 // pred_check
              _
            $region115: #{cdae_forward.1} parent=112 // pred_check_branch
              %1130 = sbr.rel (0) target = $region117
            $region116: #{cdae_forward.1} parent=112 // pred_region
              // Predicated region
              $region129: #{cdae_forward.1} parent=116 // pred_check
                _
              $region130: #{cdae_forward.1} parent=116 // pred_check_branch
                %1147 = sbr.rel (0) target = $region132
              $region131: #{cdae_forward.1} parent=116 // pred_region
                loop: start=0, step=1, limit=1
                $region133: #{cdae_forward.1} parent=131 // loop_pre_header
                  _
                $region134: #{cdae_forward.1} parent=131 // loop_header
                  %s1149 = sphi 0, %s1153
                  %p1150 = scmp.ge.s32.totalorder %s1149, 1
                  %s1154 = sphi %s1118, %s1118
                  %s1155 = sphi %s1126, %s1126
                $region135: #{cdae_forward.1} parent=131 // loop_header_branch
                  %1152 = sbr.rel (%p1150) target = $region139
                $region136: #{cdae_forward.1} parent=131 // loop_body
                  %v1156 = vld [vmem:[%s1154] sm:$0xff]
                  %1157 = vst [vmem:[%s1155] sm:$0xff] %v1156
                  %v1158 = vld [vmem:[%s1154 + $0x8] sm:$0xff]
                  %1159 = vst [vmem:[%s1155 + $0x10] sm:$0xff] %v1158
                $region137: #{cdae_forward.1} parent=131 // loop_footer
                  %s1153 = sadd.s32 1, %s1149
                $region138: #{cdae_forward.1} parent=131 // loop_footer_branch
                  %1148 = sbr.rel target = $region134
                $region139: #{cdae_forward.1} parent=131 // loop_exit
                  _
              $region132: #{cdae_forward.1} parent=116 // pred_fallthru
                _
              // Predicated region
              $region140: #{cdae_forward.1} parent=116 // pred_check
                _
              $region141: #{cdae_forward.1} parent=116 // pred_check_branch
                %1161 = sbr.rel target = $region143
              $region142: #{cdae_forward.1} parent=116 // pred_region
                _
              $region143: #{cdae_forward.1} parent=116 // pred_fallthru
                _
            $region117: #{cdae_forward.1} parent=112 // pred_fallthru
              _
            // Predicated region
            $region118: #{cdae_forward.1} parent=112 // pred_check
              _
            $region119: #{cdae_forward.1} parent=112 // pred_check_branch
              %1132 = sbr.rel target = $region121
            $region120: #{cdae_forward.1} parent=112 // pred_region
              loop: start=0, step=1, limit=1
              $region122: #{cdae_forward.1} parent=120 // loop_pre_header
                _
              $region123: #{cdae_forward.1} parent=120 // loop_header
                %s1135 = sphi 0, %s1139
                %p1136 = scmp.ge.s32.totalorder %s1135, 1
                %s1140 = sphi %s1118, %s1118
                %s1141 = sphi %s1126, %s1126
              $region124: #{cdae_forward.1} parent=120 // loop_header_branch
                %1138 = sbr.rel (%p1136) target = $region128
              $region125: #{cdae_forward.1} parent=120 // loop_body
                %v1142 = vld [vmem:[%s1140] sm:$0xff]
                %1143 = vst [vmem:[%s1141] sm:$0xff] %v1142
                %v1144 = vld [vmem:[%s1140 + $0x8] sm:$0xff]
                %1145 = vst [vmem:[%s1141 + $0x10] sm:$0xff] %v1144
              $region126: #{cdae_forward.1} parent=120 // loop_footer
                %s1139 = sadd.s32 1, %s1135
              $region127: #{cdae_forward.1} parent=120 // loop_footer_branch
                %1134 = sbr.rel target = $region123
              $region128: #{cdae_forward.1} parent=120 // loop_exit
                _
            $region121: #{cdae_forward.1} parent=112 // pred_fallthru
              _
          $region113: #{cdae_forward.1} parent=108 // pred_fallthru
            _
          %1162 = vnop
        $region109: #{cdae_forward.1} parent=96 // pred_fallthru
          _
      $region97: #{cdae_forward.1} parent=5 // pred_fallthru
        _
      %p1163 = scmp.le.s32.totalorder 2, %s16
      // Predicated region
      $region144: #{cdae_forward.1} parent=5 // pred_check
        %p1164 = pneg %p1163
      $region145: #{cdae_forward.1} parent=5 // pred_check_branch
        %1166 = sbr.rel (%p1164) target = $region147
      $region146: #{cdae_forward.1} parent=5 // pred_region
        %s1167 = ssub.s32 %s16, 2
        // Predicated region
        $region148: #{cdae_forward.1} parent=146 // pred_check
          %p1168 = pneg %p289
        $region149: #{cdae_forward.1} parent=146 // pred_check_branch
          %1170 = sbr.rel (%p1168) target = $region151
        $region150: #{cdae_forward.1} parent=146 // pred_region
          %s1171 = sand.u32 %s274, 1
          %s1172 = sand.u32 %s274, 1
          %s1173 = smul.addr %s1172, 16
          %s1174 = scalar_lea.vmem [#allocation4], %s1173
        $region151: #{cdae_forward.1} parent=146 // pred_fallthru
          _
      $region147: #{cdae_forward.1} parent=5 // pred_fallthru
        _
    $region6: #{cdae_forward.1} parent=1 // loop_footer
      %s20 = sadd.s32 1, %s16
    $region7: #{cdae_forward.1} parent=1 // loop_footer_branch
      %15 = sbr.rel target = $region3
    $region8: #{cdae_forward.1} parent=1 // loop_exit
      _

</llo_original>
